<compile_context>
chip_gen: v6e
topology: v6e:2x2x1
jax: 0.10.0
libtpu: 0.0.40
codegen_flags: <defaults>
</compile_context>

<pallas_src>
import functools
import math

import jax
import jax.numpy as jnp
from jax.experimental import pallas as pl
from jax.experimental.pallas import tpu as pltpu


def _round_up(x, m):
    return ((x + m - 1) // m) * m


# ----------------------------------------------------------------------------
# Pallas kernel
#   slab_ref : (1, 1, TT + R - 1, cw)  signal chunks (window already folded in basis)
#   basis_ref: (n_fft, 2F)             windowed DFT basis, cols interleaved [cos, sin]
#   out_ref  : (1, 1, TT, 2F)
# Frame t of this tile is the concatenation of chunk rows t .. t+R-1 (cw = hop),
# so the (TT, n_fft) frame matrix is rebuilt in VMEM from R shifted slices and fed
# to a single MXU matmul.
# ----------------------------------------------------------------------------
def _stft_kernel(slab_ref, basis_ref, out_ref, *, R, TT):
    slab = slab_ref[0, 0]                               # (TT + R - 1, cw)
    if R == 1:
        fw = slab                                       # already full frames
    else:
        fw = jnp.concatenate([slab[j:j + TT, :] for j in range(R)], axis=-1)  # (TT, n_fft)
    out_ref[0, 0] = jnp.dot(fw, basis_ref[...],
                            preferred_element_type=jnp.float32).astype(out_ref.dtype)


def _stft_pallas(slabs, basis, TT, R):
    """slabs: (BC, nT, TT+R-1, cw); basis: (n_fft, 2F) -> (BC, nT, TT, 2F) f32."""
    BC, nT, slab_rows, cw = slabs.shape
    n_fft, F2 = basis.shape

    out = pl.pallas_call(
        functools.partial(_stft_kernel, R=R, TT=TT),
        out_shape=jax.ShapeDtypeStruct((BC, nT, TT, F2), jnp.float32),
        grid_spec=pltpu.PrefetchScalarGridSpec(
            num_scalar_prefetch=0,
            grid=(BC, nT),
            in_specs=[
                pl.BlockSpec((1, 1, slab_rows, cw), lambda b, t: (b, t, 0, 0)),
                pl.BlockSpec((n_fft, F2),           lambda b, t: (0, 0)),
            ],
            out_specs=pl.BlockSpec((1, 1, TT, F2), lambda b, t: (b, t, 0, 0)),
        ),
        compiler_params=pltpu.CompilerParams(
            dimension_semantics=("parallel", "parallel")),
    )(slabs, basis)
    return out


# ----------------------------------------------------------------------------
# JAX wrapper mirroring Stft.forward
# ----------------------------------------------------------------------------
class StftPallas:
    def __init__(self, n_fft=32, win_length=None, hop_length=8, window="hann",
                 center=True, normalized=False, onesided=True,
                 frames_per_block=1024, compute_dtype=jnp.float32):
        self.n_fft = n_fft
        self.win_length = n_fft if win_length is None else win_length
        self.hop_length = hop_length
        self.center = center
        self.normalized = normalized
        self.onesided = onesided
        self.window = window
        self.frames_per_block = frames_per_block
        self.compute_dtype = compute_dtype

        # ---- deterministic parameter setup (no checkpoints) ----
        if window == "hann":
            # torch.hann_window default is periodic: 0.5 - 0.5*cos(2*pi*n/win_length)
            n = jnp.arange(self.win_length, dtype=jnp.float32)
            win = 0.5 - 0.5 * jnp.cos(2.0 * jnp.pi * n / self.win_length)
        elif window is None:
            win = jnp.ones((self.win_length,), dtype=jnp.float32)
        else:
            raise ValueError(f"{window} window is not implemented")
        # torch.stft centers a shorter window inside n_fft
        pad_l = (self.n_fft - self.win_length) // 2
        pad_r = self.n_fft - self.win_length - pad_l
        win_full = jnp.pad(win, (pad_l, pad_r))                      # (n_fft,)

        # Merged, window-folded DFT basis:
        #   X[t,k] = sum_n x[t*hop+n] * win[n] * exp(-2*pi*i*k*n/n_fft)
        # Columns interleaved [cos_0, -sin_0, cos_1, -sin_1, ...] so (.., 2F) reshapes
        # straight to (.., F, 2) = (real, imag).
        F = self.n_fft // 2 + 1 if self.onesided else self.n_fft
        n = jnp.arange(self.n_fft, dtype=jnp.float32)[:, None]       # (n_fft, 1)
        k = jnp.arange(F, dtype=jnp.float32)[None, :]                 # (1, F)
        ang = 2.0 * jnp.pi * n * k / self.n_fft
        basis = jnp.stack([jnp.cos(ang), -jnp.sin(ang)], axis=-1)     # (n_fft, F, 2)
        basis = basis * win_full[:, None, None]
        if self.normalized:
            basis = basis * (win_full.shape[0] ** (-0.5))
        self.basis = basis.reshape(self.n_fft, 2 * F).astype(jnp.float32)
        self.n_freq = F

    def __call__(self, x, ilens=None):
        x = jnp.asarray(x, dtype=jnp.float32)
        bs = x.shape[0]
        if x.ndim == 3:
            multi_channel = True
            C = x.shape[2]
            # (B, N, C) -> (B, C, N) -> (B*C, N)
            x = jnp.transpose(x, (0, 2, 1)).reshape(bs * C, x.shape[1])
        else:
            multi_channel = False
            C = 1
        BC = x.shape[0]

        # center (reflect) padding
        if self.center:
            pad = self.n_fft // 2
            xp = jnp.pad(x, ((0, 0), (pad, pad)), mode="reflect")
        else:
            xp = x
        Lp = xp.shape[1]
        T = (Lp - self.n_fft) // self.hop_length + 1                  # frames

        # ---- chunk decomposition (avoid materializing 4x frames in HBM) ----
        if self.n_fft % self.hop_length == 0:
            R = self.n_fft // self.hop_length
            cw = self.hop_length
        else:
            R = 1
            cw = self.n_fft

        TT = min(self.frames_per_block, _round_up(T, 8))              # frames per block
        nT = -(-T // TT)
        T_pad = nT * TT

        if R > 1:
            n_chunks = T_pad + R - 1
            len_needed = n_chunks * cw
            x2 = xp
            if Lp < len_needed:
                x2 = jnp.pad(x2, ((0, 0), (0, len_needed - Lp)))
            x2 = x2[:, :len_needed]
            chunks = x2.reshape(BC, n_chunks, cw)                     # pure reshape
        else:
            # fallback: hop does not divide n_fft -> materialize frames directly
            n_chunks = T_pad
            len_needed = (T_pad - 1) * self.hop_length + self.n_fft
            x2 = xp
            if Lp < len_needed:
                x2 = jnp.pad(x2, ((0, 0), (0, len_needed - Lp)))
            idx = (jnp.arange(T_pad)[:, None] * self.hop_length
                   + jnp.arange(self.n_fft)[None, :])
            chunks = x2[:, idx]                                       # (BC, T_pad, n_fft)

        # per-tile slabs with the small (R-1)-chunk overlap duplicated so BlockSpecs
        # stay non-overlapping
        slab_rows = TT + R - 1
        tidx = jnp.arange(nT)[:, None] * TT + jnp.arange(slab_rows)[None, :]
        slabs = jnp.take(chunks, tidx, axis=1)                        # (BC, nT, slab_rows, cw)

        out2d = _stft_pallas(slabs.astype(self.compute_dtype),
                             self.basis.astype(self.compute_dtype),
                             TT, R)                                   # (BC, nT, TT, 2F)
        out = out2d.reshape(BC, nT * TT, self.n_freq, 2)[:, :T]       # (BC, T, F, 2)

        if multi_channel:
            # (B, C, T, F, 2) -> (B, T, C, F, 2)
            out = out.reshape(bs, C, T, self.n_freq, 2)
            out = jnp.transpose(out, (0, 2, 1, 3, 4))
        # else already (B, T, F, 2)

        if ilens is not None:
            ilens = jnp.asarray(ilens, dtype=jnp.int32)
            if self.center:
                ilens_eff = ilens + 2 * (self.n_fft // 2)
            else:
                ilens_eff = ilens
            olens = (ilens_eff - self.n_fft) // self.hop_length + 1   # (B,)
            frame_idx = jnp.arange(T, dtype=jnp.int32)                # (T,)
            pad_mask = frame_idx[None, :] >= olens[:, None]           # (B, T) True = pad
            bshape = (bs, T) + (1,) * (out.ndim - 2)
            out = jnp.where(pad_mask.reshape(bshape), 0.0, out)
        else:
            olens = None

        return out, olens

    # TODO(synk): Stft.inverse (iSTFT) is not implemented; only the forward pass is kernelized.


# ----------------------------------------------------------------------------
# Test
# ----------------------------------------------------------------------------
if __name__ == "__main__":
    key = jax.random.PRNGKey(0)
    B, N = 2, 128
    n_fft, hop = 32, 8

    x = jax.random.normal(key, (B, N), dtype=jnp.float32)
    ilens = jnp.array([128, 100], dtype=jnp.int32)

    stft = StftPallas(n_fft=n_fft, win_length=n_fft, hop_length=hop,
                      window="hann", center=True, normalized=False, onesided=True)
    out, olens = stft(x, ilens)
    out = jax.block_until_ready(out)

    # Pure-JAX reference of the same math (frame + hann window + DFT matmul + mask)
    win = 0.5 - 0.5 * jnp.cos(2.0 * jnp.pi * jnp.arange(n_fft, dtype=jnp.float32) / n_fft)
    pad = n_fft // 2
    xp = jnp.pad(x, ((0, 0), (pad, pad)), mode="reflect")
    T = (xp.shape[1] - n_fft) // hop + 1
    fidx = jnp.arange(T)[:, None] * hop + jnp.arange(n_fft)[None, :]
    fw = xp[:, fidx] * win[None, None, :]
    nn = jnp.arange(n_fft, dtype=jnp.float32)[:, None]
    kk = jnp.arange(n_fft // 2 + 1, dtype=jnp.float32)[None, :]
    ang = 2.0 * jnp.pi * nn * kk / n_fft
    hp = jax.lax.Precision.HIGHEST
    ref_re = jnp.einsum("btn,nf->btf", fw, jnp.cos(ang), precision=hp)
    ref_im = jnp.einsum("btn,nf->btf", fw, -jnp.sin(ang), precision=hp)
    ref = jnp.stack([ref_re, ref_im], axis=-1)
    olens_ref = (ilens + 2 * pad - n_fft) // hop + 1
    mask = jnp.arange(T)[None, :] >= olens_ref[:, None]
    ref = jnp.where(mask[:, :, None, None], 0.0, ref)

    assert out.shape == (B, T, n_fft // 2 + 1, 2), out.shape
    assert jnp.allclose(out, ref, atol=2e-4, rtol=2e-4), float(jnp.max(jnp.abs(out - ref)))
    assert jnp.array_equal(olens, olens_ref)

    # Also exercise the multi-channel path: (B, N, C) -> (B, T, C, F, 2)
    C = 2
    xc = jax.random.normal(jax.random.PRNGKey(1), (B, N, C), dtype=jnp.float32)
    out_c, _ = stft(xc, ilens)
    out_c = jax.block_until_ready(out_c)
    assert out_c.shape == (B, T, C, n_fft // 2 + 1, 2), out_c.shape
    # per-channel value check against the single-channel path
    out_c0, _ = stft(xc[:, :, 0], ilens)
    assert jnp.allclose(out_c[:, :, 0], out_c0, atol=2e-4, rtol=2e-4)

    print("KERNEL_OK")
</pallas_src>

<mosaic_0001>
module attributes {stable_mosaic.version = 11 : i64} {
  func.func @_stft_kernel(%arg0: i32, %arg1: i32, %arg2: memref<1x1x27x8xf32, #tpu.memory_space<vmem>>, %arg3: memref<32x34xf32, #tpu.memory_space<vmem>>, %arg4: memref<1x1x24x34xf32, #tpu.memory_space<vmem>>) attributes {dimension_semantics = [#tpu.dimension_semantics<parallel>, #tpu.dimension_semantics<parallel>], iteration_bounds = array<i64: 2, 1>, scalar_prefetch = 0 : i64, scratch_operands = 0 : i64, tpu.core_type = #tpu.core_type<tc>, window_params = [{transform_indices = @transform_0, window_bounds = array<i64: 1, 1, 27, 8>}, {pipeline_mode = #tpu.pipeline_mode<synchronous>, transform_indices = @transform_1, window_bounds = array<i64: 32, 34>}, {transform_indices = @transform_2, window_bounds = array<i64: 1, 1, 24, 34>}]} {
    %c0 = arith.constant 0 : index
    %c0_0 = arith.constant 0 : index
    %c0_1 = arith.constant 0 : index
    %c0_2 = arith.constant 0 : index
    %0 = vector.load %arg2[%c0, %c0_0, %c0_1, %c0_2] : memref<1x1x27x8xf32, #tpu.memory_space<vmem>>, vector<1x1x27x8xf32>
    %1 = vector.shape_cast %0 : vector<1x1x27x8xf32> to vector<27x8xf32>
    %2 = vector.extract_strided_slice %1 {offsets = [0, 0], sizes = [24, 8], strides = [1, 1]} : vector<27x8xf32> to vector<24x8xf32>
    %3 = vector.extract_strided_slice %1 {offsets = [1, 0], sizes = [24, 8], strides = [1, 1]} : vector<27x8xf32> to vector<24x8xf32>
    %4 = vector.extract_strided_slice %1 {offsets = [2, 0], sizes = [24, 8], strides = [1, 1]} : vector<27x8xf32> to vector<24x8xf32>
    %5 = vector.extract_strided_slice %1 {offsets = [3, 0], sizes = [24, 8], strides = [1, 1]} : vector<27x8xf32> to vector<24x8xf32>
    %6 = tpu.concatenate %2, %3, %4, %5 in 1 : vector<24x8xf32>, vector<24x8xf32>, vector<24x8xf32>, vector<24x8xf32> -> vector<24x32xf32>
    %c0_3 = arith.constant 0 : index
    %c0_4 = arith.constant 0 : index
    %7 = vector.load %arg3[%c0_3, %c0_4] : memref<32x34xf32, #tpu.memory_space<vmem>>, vector<32x34xf32>
    %cst = arith.constant dense<0.000000e+00> : vector<24x34xf32>
    %8 = tpu.matmul %6, %7, %cst {dimension_numbers = #tpu.dot_dimension_numbers<[1], [0], [0], [1], [0, 0, 1, 1], [], []>} : vector<24x32xf32>, vector<32x34xf32>, vector<24x34xf32> -> vector<24x34xf32>
    %c0_5 = arith.constant 0 : index
    %c0_6 = arith.constant 0 : index
    %c0_7 = arith.constant 0 : index
    %c0_8 = arith.constant 0 : index
    %9 = vector.load %arg4[%c0_5, %c0_6, %c0_7, %c0_8] : memref<1x1x24x34xf32, #tpu.memory_space<vmem>>, vector<1x1x24x34xf32>
    %10 = vector.shape_cast %9 : vector<1x1x24x34xf32> to vector<24x34xf32>
    %11 = vector.shape_cast %8 : vector<24x34xf32> to vector<1x1x24x34xf32>
    tpu.vector_store %arg4[%c0_5, %c0_6, %c0_7, %c0_8], %11 {strides = array<i32>} : memref<1x1x24x34xf32, #tpu.memory_space<vmem>>, vector<1x1x24x34xf32>,
    return
  }
  func.func @transform_0(%arg0: i32, %arg1: i32) -> (i32, i32, i32, i32) {
    %c0_i32 = arith.constant 0 : i32
    %c0_i32_0 = arith.constant 0 : i32
    %c0_i32_1 = arith.constant 0 : i32
    return %arg0, %arg1, %c0_i32, %c0_i32_0 : i32, i32, i32, i32
  }
  func.func @transform_1(%arg0: i32, %arg1: i32) -> (i32, i32) {
    %c0_i32 = arith.constant 0 : i32
    %c0_i32_0 = arith.constant 0 : i32
    %c0_i32_1 = arith.constant 0 : i32
    return %c0_i32, %c0_i32_0 : i32, i32
  }
  func.func @transform_2(%arg0: i32, %arg1: i32) -> (i32, i32, i32, i32) {
    %c0_i32 = arith.constant 0 : i32
    %c0_i32_0 = arith.constant 0 : i32
    %c0_i32_1 = arith.constant 0 : i32
    return %arg0, %arg1, %c0_i32, %c0_i32_0 : i32, i32, i32, i32
  }
}

</mosaic_0001>

<llo_original>
// kernel: tpu_custom_call.1
$region0: #{tpu_custom_call.1}
  #allocation0 [shape = 'u32[]', space=smem, size = 0x4, offset = 0x4, fixed_abs, tag = 'smem constant byte address 0x4 - core index']
  #allocation1 [shape = 'u32[144,128]{1,0:T(1,128)}', space=vmem, size = 0x12000, scoped, tag = 'internal scratch']
  %s0 = inlined_call_operand.vmem [shape: f32[2,1,27,8], index: 0, kind: input, shape index: {}]
  %s1 = inlined_call_operand.vmem [shape: f32[32,34], index: 1, kind: input, shape index: {}]
  %s2 = inlined_call_operand.hbm [shape: f32[2,1,24,34], index: 2, kind: output, shape index: {}]
  %s3 = sld [smem:[#allocation0]]
  $region41: #{tpu_custom_call.1} parent=0
    _
  %s5 = ssub.s32 1, %s3
  %s6 = scalar_select 0, %s5, %s3
  $region1: #{tpu_custom_call.1} parent=0
    #allocation2 [shape = 'u8[24576]{0}', space=vmem, size = 0x6000, scoped, tag = 'output window, operand 0']
    #allocation3 [shape = 's32[2]{0}', space=sflag, size = 0x8, scoped, tag = 'scoped memory for tpu_custom_call.1']
    %7 = vsyncpa [#allocation3], 0
    %s8 = scalar_lea.sflag [#allocation3], 1
    %9 = vsyncpa %s8, 0
    loop: start=0, step=1, limit=4
    $region2: #{tpu_custom_call.1} parent=1 // loop_pre_header
      _
    $region3: #{tpu_custom_call.1} parent=1 // loop_header
      %s11 = sphi 0, %s15
      %p12 = scmp.ge.s32.totalorder %s11, 4
      %s18 = sphi 0, %s30
      %s19 = sphi 0, %s26
      %s20 = sphi 0, %s18
      %s21 = sphi 0, %s19
      %s22 = sphi 0, %s20
      %s23 = sphi 0, %s21
      %s35 = sphi 0, %s37
      %s38 = sphi 0, %s35
      %s39 = sphi 0, %s38
      %s55 = sphi 0, %s39
      %s59 = sphi 0, %s59
      %s61 = sphi 0, %s59
      %s62 = sphi 0, %s61
      %s76 = sphi 0, %s62
      %s84 = sphi 0, %s86
      %s87 = sphi 0, %s84
      %s88 = sphi 0, %s87
      %s104 = sphi 0, %s88
    $region4: #{tpu_custom_call.1} parent=1 // loop_header_branch
      %14 = sbr.rel (%p12) target = $region8
    $region5: #{tpu_custom_call.1} parent=1 // loop_body
      %s16 = ssub.s32 %s11, 1
      %s17 = ssub.s32 %s11, 2
      %s24 = sadd.s32 1, %s19
      %p25 = scmp.ge.s32.totalorder %s24, 1
      %s26 = scalar_select %p25, 0, %s24
      %s27 = sadd.s32 1, %s18
      %s28 = scalar_select %p25, %s27, %s18
      %p29 = scmp.ge.s32.totalorder %s28, 2
      %s30 = scalar_select %p29, 0, %s28
      %s31 = ssub.s32 %s18, %s30
      %s32 = ssub.s32 %s19, %s26
      %s33 = sor.u32 %s31, %s32
      %p34 = scmp.eq.s32.totalorder %s33, 0
      %s36 = sadd.s32 %s35, 1
      %s37 = scalar_select %p34, %s35, %s36
      %p40 = pneg %p34
      %p41 = scmp.eq.s32.totalorder %s11, 1
      %p42 = por %p40, %p41
      %p43 = scmp.ne.s32.totalorder %s35, %s38
      %p44 = scmp.eq.s32.totalorder %s11, 0
      %p45 = por %p43, %p44
      %p46 = scmp.ne.s32.totalorder %s35, %s38
      %p47 = scmp.eq.s32.totalorder %s16, 1
      %p48 = por %p46, %p47
      %p49 = scmp.ne.s32.totalorder %s38, %s39
      %p50 = scmp.eq.s32.totalorder %s16, 0
      %p51 = por %p49, %p50
      %p52 = scmp.ne.s32.totalorder %s38, %s39
      %p53 = scmp.eq.s32.totalorder %s17, 1
      %p54 = por %p52, %p53
      %p56 = scmp.ne.s32.totalorder %s39, %s55
      %p57 = scmp.eq.s32.totalorder %s17, 0
      %p58 = por %p56, %p57
      %s60 = sadd.s32 %s59, 1
      %p63 = scmp.eq.s32.totalorder %s11, 1
      %p64 = scmp.ne.s32.totalorder %s59, %s61
      %p65 = scmp.eq.s32.totalorder %s11, 0
      %p66 = por %p64, %p65
      %p67 = scmp.ne.s32.totalorder %s59, %s61
      %p68 = scmp.eq.s32.totalorder %s16, 1
      %p69 = por %p67, %p68
      %p70 = scmp.ne.s32.totalorder %s61, %s62
      %p71 = scmp.eq.s32.totalorder %s16, 0
      %p72 = por %p70, %p71
      %p73 = scmp.ne.s32.totalorder %s61, %s62
      %p74 = scmp.eq.s32.totalorder %s17, 1
      %p75 = por %p73, %p74
      %p77 = scmp.ne.s32.totalorder %s62, %s76
      %p78 = scmp.eq.s32.totalorder %s17, 0
      %p79 = por %p77, %p78
      %s80 = ssub.s32 %s18, %s30
      %s81 = ssub.s32 %s19, %s26
      %s82 = sor.u32 %s80, %s81
      %p83 = scmp.eq.s32.totalorder %s82, 0
      %s85 = sadd.s32 %s84, 1
      %s86 = scalar_select %p83, %s84, %s85
      %p89 = pneg %p83
      %p90 = scmp.eq.s32.totalorder %s11, 1
      %p91 = por %p89, %p90
      %p92 = scmp.ne.s32.totalorder %s84, %s87
      %p93 = scmp.eq.s32.totalorder %s11, 0
      %p94 = por %p92, %p93
      %p95 = scmp.ne.s32.totalorder %s84, %s87
      %p96 = scmp.eq.s32.totalorder %s16, 1
      %p97 = por %p95, %p96
      %p98 = scmp.ne.s32.totalorder %s87, %s88
      %p99 = scmp.eq.s32.totalorder %s16, 0
      %p100 = por %p98, %p99
      %p101 = scmp.ne.s32.totalorder %s87, %s88
      %p102 = scmp.eq.s32.totalorder %s17, 1
      %p103 = por %p101, %p102
      %p105 = scmp.ne.s32.totalorder %s88, %s104
      %p106 = scmp.eq.s32.totalorder %s17, 0
      %p107 = por %p105, %p106
      %p108 = scmp.le.s32.totalorder 1, %s11
      %p109 = scmp.lt.s32.totalorder %s11, 3
      %p110 = pnand %p108, %p109
      %p111 = pneg %p110
      // Predicated region
      $region9: #{tpu_custom_call.1} parent=5 // pred_check
        _
      $region10: #{tpu_custom_call.1} parent=5 // pred_check_branch
        %113 = sbr.rel (%p110) target = $region12
      $region11: #{tpu_custom_call.1} parent=5 // pred_region
        %s114 = ssub.s32 %s11, 1
        // Predicated region
        $region13: #{tpu_custom_call.1} parent=11 // pred_check
          %p115 = pneg %p72
        $region14: #{tpu_custom_call.1} parent=11 // pred_check_branch
          %117 = sbr.rel (%p115) target = $region16
        $region15: #{tpu_custom_call.1} parent=11 // pred_region
          _
        $region16: #{tpu_custom_call.1} parent=11 // pred_fallthru
          _
      $region12: #{tpu_custom_call.1} parent=5 // pred_fallthru
        _
      %p118 = scmp.lt.s32.totalorder %s11, 2
      // Predicated region
      $region17: #{tpu_custom_call.1} parent=5 // pred_check
        %p119 = pneg %p118
      $region18: #{tpu_custom_call.1} parent=5 // pred_check_branch
        %121 = sbr.rel (%p119) target = $region20
      $region19: #{tpu_custom_call.1} parent=5 // pred_region
        // Predicated region
        $region21: #{tpu_custom_call.1} parent=19 // pred_check
          %p122 = pneg %p45
        $region22: #{tpu_custom_call.1} parent=19 // pred_check_branch
          %124 = sbr.rel (%p122) target = $region24
        $region23: #{tpu_custom_call.1} parent=19 // pred_region
          %p125 = scmp.lt.s32.totalorder %s18, 1
          %s126 = scalar_select %p125, %s18, 1
          %p127 = scmp.lt.s32.totalorder %s19, 0
          %s128 = scalar_select %p127, %s19, 0
          %s129 = smul.addr %s128, 4
          %s130 = smul.addr %s126, 4
          %s131 = sadd.s32 %s129, %s130
          %s132 = smul.addr %s131, 8
          %s133 = scalar_lea.vmem %s0, %s132
        $region24: #{tpu_custom_call.1} parent=19 // pred_fallthru
          _
      $region20: #{tpu_custom_call.1} parent=5 // pred_fallthru
        _
      %p134 = scmp.le.s32.totalorder 1, %s11
      %p135 = scmp.lt.s32.totalorder %s11, 3
      %p136 = pnand %p134, %p135
      %p137 = pneg %p136
      // Predicated region
      $region25: #{tpu_custom_call.1} parent=5 // pred_check
        _
      $region26: #{tpu_custom_call.1} parent=5 // pred_check_branch
        %139 = sbr.rel (%p136) target = $region28
      $region27: #{tpu_custom_call.1} parent=5 // pred_region
        %s140 = ssub.s32 %s11, 1
        %p141 = scmp.lt.s32.totalorder %s20, 1
        %s142 = scalar_select %p141, %s20, 1
        %p143 = scmp.lt.s32.totalorder %s21, 0
        %s144 = scalar_select %p143, %s21, 0
        %s145 = smul.addr %s144, 4
        %s146 = smul.addr %s142, 4
        %s147 = sadd.s32 %s145, %s146
        %s148 = smul.addr %s147, 8
        %s149 = scalar_lea.vmem %s0, %s148
        %p150 = pneg %p51
        %p151 = pneg %p48
        %p152 = pneg %p72
        %p153 = pneg %p69
        %p154 = pneg %p100
        %p155 = pneg %p97
        %s156 = sand.u32 %s87, 1
        %s157 = scalar_lea.sflag [#allocation3], %s156
        %s158 = sand.u32 %s87, 1
        %s159 = smul.addr %s158, 24
        %s160 = scalar_lea.vmem [#allocation2], %s159
        %p161 = scmp.lt.s32.totalorder %s20, 1
        %s162 = scalar_select %p161, %s20, 1
        %p163 = scmp.lt.s32.totalorder %s21, 0
        %s164 = scalar_select %p163, %s21, 0
        %s165 = smul.addr %s164, 4
        %s166 = smul.addr %s162, 4
        %s167 = sadd.s32 %s165, %s166
        %s168 = smul.addr %s167, 8
        %s169 = scalar_lea.vmem %s0, %s168
        %v170 = vld [vmem:[%s169] sm:$0xff]
        %v171 = vld [vmem:[%s169 + $0x8] sm:$0xff]
        %v172 = vld [vmem:[%s169 + $0x10] sm:$0xff]
        %v173 = vld [vmem:[%s169 + $0x18] sm:$0x7]
        %vm178 = vcmask 1046528
        %v179 = vrot.slane %v170, 1
        %v180 = vrot.slane %v171, 1
        %v181 = vsel %vm178, %v179, %v180
        %v182 = vrot.slane %v172, 1
        %v183 = vsel %vm178, %v180, %v182
        %v184 = vrot.slane %v173, 1
        %v185 = vsel %vm178, %v182, %v184
        %186 = vrot.lane.b32.xlu0 %v181, 8
        %v187 = vpop.permute.xlu0 %186
        %188 = vrot.lane.b32.xlu0 %v183, 8
        %v189 = vpop.permute.xlu0 %188
        %190 = vrot.lane.b32.xlu0 %v185, 8
        %v191 = vpop.permute.xlu0 %190
        %vm195 = vcmask 1045504
        %v196 = vrot.slane %v170, 2
        %v197 = vrot.slane %v171, 2
        %v198 = vsel %vm195, %v196, %v197
        %v199 = vrot.slane %v172, 2
        %v200 = vsel %vm195, %v197, %v199
        %v201 = vrot.slane %v173, 2
        %v202 = vsel %vm195, %v199, %v201
        %203 = vrot.lane.b32.xlu0 %v198, 16
        %v204 = vpop.permute.xlu0 %203
        %205 = vrot.lane.b32.xlu0 %v200, 16
        %v206 = vpop.permute.xlu0 %205
        %207 = vrot.lane.b32.xlu0 %v202, 16
        %v208 = vpop.permute.xlu0 %207
        %vm212 = vcmask 1044480
        %v213 = vrot.slane %v170, 3
        %v214 = vrot.slane %v171, 3
        %v215 = vsel %vm212, %v213, %v214
        %v216 = vrot.slane %v172, 3
        %v217 = vsel %vm212, %v214, %v216
        %v218 = vrot.slane %v173, 3
        %v219 = vsel %vm212, %v216, %v218
        %220 = vrot.lane.b32.xlu0 %v215, 24
        %v221 = vpop.permute.xlu0 %220
        %222 = vrot.lane.b32.xlu0 %v217, 24
        %v223 = vpop.permute.xlu0 %222
        %224 = vrot.lane.b32.xlu0 %v219, 24
        %v225 = vpop.permute.xlu0 %224
        %vm229 = vcmask 64512
        %v230 = vsel %vm229, %v170, %v187
        %v231 = vsel %vm229, %v171, %v189
        %v232 = vsel %vm229, %v172, %v191
        %vm233 = vcmask 130048
        %v234 = vsel %vm233, %v230, %v204
        %v235 = vsel %vm233, %v231, %v206
        %v236 = vsel %vm233, %v232, %v208
        %vm237 = vcmask 195584
        %v238 = vsel %vm237, %v234, %v221
        %v239 = vsel %vm237, %v235, %v223
        %v240 = vsel %vm237, %v236, %v225
        %v241 = vld [vmem:[%s1] sm:$0xff]
        %v242 = vld [vmem:[%s1 + $0x8] sm:$0xff]
        %v243 = vld [vmem:[%s1 + $0x10] sm:$0xff]
        %v244 = vld [vmem:[%s1 + $0x18] sm:$0xff]
        %vm245 = vcmask 261120
        %v247 = vsel %vm245, %v238, 0
        %v250 = vsel %vm245, %v239, 0
        %v253 = vsel %vm245, %v240, 0
        %255 = vmatprep.subr.mxu0 0.0
        %256 = vmatpush1.msra.mxu0 0.0
        %257 = vmatprep.subr.mxu0 0.0
        %258 = vmatpush1.msra.mxu0 0.0
        %259 = vmatprep.subr.mxu0 0.0
        %260 = vmatpush1.msra.mxu0 0.0
        %261 = vmatprep.subr.mxu0 0.0
        %262 = vmatpush1.msra.mxu0 0.0
        %263 = vmatprep.subr.mxu0 0.0
        %264 = vmatpush1.msra.mxu0 0.0
        %265 = vmatprep.subr.mxu0 0.0
        %266 = vmatpush1.msra.mxu0 0.0
        %267 = vmatprep.subr.mxu0 0.0
        %268 = vmatpush1.msra.mxu0 0.0
        %269 = vmatprep.subr.mxu0 0.0
        %270 = vmatpush1.msra.mxu0 0.0
        %271 = vmatprep.subr.mxu0 0.0
        %272 = vmatpush1.msra.mxu0 0.0
        %273 = vmatprep.subr.mxu0 0.0
        %274 = vmatpush1.msra.mxu0 0.0
        %275 = vmatprep.subr.mxu0 0.0
        %276 = vmatpush1.msra.mxu0 0.0
        %277 = vmatprep.subr.mxu0 0.0
        %278 = vmatpush1.msra.mxu0 0.0
        %279 = vmatprep.subr.mxu0 0.0
        %280 = vmatpush1.msra.mxu0 %v244
        %281 = vmatprep.subr.mxu0 0.0
        %282 = vmatpush1.msra.mxu0 %v243
        %283 = vmatprep.subr.mxu0 0.0
        %284 = vmatpush1.msra.mxu0 %v242
        %285 = vmatprep.subr.mxu0 0.0
        %286 = vmatpush1.msra.mxu0 %v241
        %287 = vmatprep.subr.mxu0 0.0
        %288 = vmatpush2.msra.mxu0 0.0
        %289 = vmatprep.subr.mxu0 0.0
        %290 = vmatpush2.msra.mxu0 0.0
        %291 = vmatprep.subr.mxu0 0.0
        %292 = vmatpush2.msra.mxu0 0.0
        %293 = vmatprep.subr.mxu0 0.0
        %294 = vmatpush2.msra.mxu0 0.0
        %295 = vmatprep.subr.mxu0 0.0
        %296 = vmatpush2.msra.mxu0 0.0
        %297 = vmatprep.subr.mxu0 0.0
        %298 = vmatpush2.msra.mxu0 0.0
        %299 = vmatprep.subr.mxu0 0.0
        %300 = vmatpush2.msra.mxu0 0.0
        %301 = vmatprep.subr.mxu0 0.0
        %302 = vmatpush2.msra.mxu0 0.0
        %303 = vmatprep.subr.mxu0 0.0
        %304 = vmatpush2.msra.mxu0 0.0
        %305 = vmatprep.subr.mxu0 0.0
        %306 = vmatpush2.msra.mxu0 0.0
        %307 = vmatprep.subr.mxu0 0.0
        %308 = vmatpush2.msra.mxu0 0.0
        %309 = vmatprep.subr.mxu0 0.0
        %310 = vmatpush2.msra.mxu0 0.0
        %311 = vmatprep.subr.mxu0 0.0
        %312 = vmatpush2.msra.mxu0 0.0
        %313 = vmatprep.subr.mxu0 0.0
        %314 = vmatpush2.msra.mxu0 0.0
        %315 = vmatprep.subr.mxu0 0.0
        %316 = vmatpush2.msra.mxu0 0.0
        %317 = vmatprep.subr.mxu0 0.0
        %318 = vmatpush2.msra.mxu0 0.0
        %319 = vmatprep.mubr.f32.mxu0 0.0
        %320 = vmatmul.mubr.f32.gmra.mxu0 %v247
        %v321 = vpop.f32.mrf.mxu0
        %v322 = vadd.f32 0.0, %v321
        %v323 = vpop.f32.mrf.mxu0
        %324 = vmatprep.mubr.f32.mxu0 0.0
        %325 = vmatmul.mubr.f32.gmra.mxu0 %v250
        %v326 = vpop.f32.mrf.mxu0
        %v327 = vadd.f32 0.0, %v326
        %v328 = vpop.f32.mrf.mxu0
        %329 = vmatprep.mubr.f32.mxu0 0.0
        %330 = vmatmul.mubr.f32.gmra.mxu0 %v253
        %v331 = vpop.f32.mrf.mxu0
        %v332 = vadd.f32 0.0, %v331
        %v333 = vpop.f32.mrf.mxu0
        %334 = vdwg.mxu0
        %vm335 = vcmask 277504
        %336 = vst.msk [vmem:[%s160] sm:$0xff] %vm335, %v322
        %337 = vst.msk [vmem:[%s160 + $0x8] sm:$0xff] %vm335, %v327
        %338 = vst.msk [vmem:[%s160 + $0x10] sm:$0xff] %vm335, %v332
        %s339 = sand.u32 %s87, 1
        %s340 = scalar_lea.sflag [#allocation3], %s339
        %s341 = sand.u32 %s87, 1
        %s342 = smul.addr %s341, 24
        %s343 = scalar_lea.vmem [#allocation2], %s342
        // Predicated region
        $region29: #{tpu_custom_call.1} parent=27 // pred_check
          %p344 = pneg %p97
        $region30: #{tpu_custom_call.1} parent=27 // pred_check_branch
          %346 = sbr.rel (%p344) target = $region32
        $region31: #{tpu_custom_call.1} parent=27 // pred_region
          %s348 = ssub.s32 384, 384
          %349 = vsyncadd %s340, %s348
          %s350 = smul.addr %s21, 3
          %s351 = smul.addr %s20, 3
          %s352 = sadd.s32 %s350, %s351
          %s353 = smul.addr %s352, 128
          %s354 = scalar_lea.hbm %s2, %s353
          %s355 = sshll.u32 %s343, 4
          %s356 = int_to_ptr.vmem [resolvable:$true] %s355
          %361 = dma.vmem_to_hbm [thread:$0]  %s356, 384, %s354, %s340, 128, 128, 8
        $region32: #{tpu_custom_call.1} parent=27 // pred_fallthru
          _
      $region28: #{tpu_custom_call.1} parent=5 // pred_fallthru
        _
      %p362 = scmp.le.s32.totalorder 2, %s11
      // Predicated region
      $region33: #{tpu_custom_call.1} parent=5 // pred_check
        %p363 = pneg %p362
      $region34: #{tpu_custom_call.1} parent=5 // pred_check_branch
        %365 = sbr.rel (%p363) target = $region36
      $region35: #{tpu_custom_call.1} parent=5 // pred_region
        %s366 = ssub.s32 %s11, 2
        // Predicated region
        $region37: #{tpu_custom_call.1} parent=35 // pred_check
          %p367 = pneg %p103
        $region38: #{tpu_custom_call.1} parent=35 // pred_check_branch
          %369 = sbr.rel (%p367) target = $region40
        $region39: #{tpu_custom_call.1} parent=35 // pred_region
          %s370 = sand.u32 %s88, 1
          %s371 = scalar_lea.sflag [#allocation3], %s370
          %s372 = sand.u32 %s88, 1
          %s373 = smul.addr %s372, 24
          %s374 = scalar_lea.vmem [#allocation2], %s373
          %375 = dma.done %s371, 384
        $region40: #{tpu_custom_call.1} parent=35 // pred_fallthru
          _
      $region36: #{tpu_custom_call.1} parent=5 // pred_fallthru
        _
    $region6: #{tpu_custom_call.1} parent=1 // loop_footer
      %s15 = sadd.s32 1, %s11
    $region7: #{tpu_custom_call.1} parent=1 // loop_footer_branch
      %10 = sbr.rel target = $region3
    $region8: #{tpu_custom_call.1} parent=1 // loop_exit
      _
    %376 = vsyncpa [#allocation3], 1
    %s377 = scalar_lea.sflag [#allocation3], 1
    %378 = vsyncpa %s377, 1

</llo_original>
